<compile_context>
chip_gen: v7x
topology: tpu7x:2x2x1
jax: 0.10.0
libtpu: 0.0.40
codegen_flags: <defaults>
</compile_context>

<pallas_src>
import jax
import jax.numpy as jnp
from jax.experimental import pallas as pl
from jax.experimental.pallas import tpu as pltpu


# Contract lhs dim 1 with rhs dim 1 (the q @ k.T MXU pattern).
_NT_DIMS = (((1,), (1,)), ((), ()))


def critic_kernel(x_ref, w1t_ref, b1t_ref, w2t_ref, b2t_ref, w3c_ref, b3_ref, ot_ref):
    # Layer 1: (hidden, n_states) x (TB, n_states)^T -> (hidden, TB), f32 accumulate.
    # The x tile arrives batch-major; the transpose lives in the MXU feed (NT dot).
    x_t = x_ref[...].astype(w1t_ref.dtype)               # VPU cast (no-op on the f32 path)
    h1 = jax.lax.dot_general(w1t_ref[...], x_t, dimension_numbers=_NT_DIMS,
                             preferred_element_type=jnp.float32)
    h1 = jnp.maximum(h1 + b1t_ref[...], 0.0)              # bias + ReLU in f32 (VPU)

    # Layer 2: (hidden, hidden) @ (hidden, TB) -> (hidden, TB)
    h2 = jnp.dot(w2t_ref[...], h1.astype(w2t_ref.dtype),
                 preferred_element_type=jnp.float32)
    h2 = jnp.maximum(h2 + b2t_ref[...], 0.0)

    # Layer 3 (hidden -> 1): skip the MXU (would waste 255/256 of the result width);
    # VPU multiply + XLU sublane reduce.  b3 is a scalar read from SMEM.
    out = jnp.sum(h2 * w3c_ref[...], axis=0, keepdims=True) + b3_ref[0, 0]
    ot_ref[...] = out.astype(ot_ref.dtype)                 # lane-dense (1, TB) store


def prepare_critic_params(params, *, use_bf16=False):
    """One-time layout/dtype prep — call at init / param-update time, NOT per forward."""
    mm_dtype = jnp.bfloat16 if use_bf16 else jnp.float32
    return dict(
        w1t=jnp.asarray(params["w1"]).T.astype(mm_dtype),                    # (hidden, n_states)
        w2t=jnp.asarray(params["w2"]).T.astype(mm_dtype),                    # (hidden, hidden)
        b1t=jnp.asarray(params["b1"]).reshape(-1, 1).astype(jnp.float32),    # (hidden, 1)
        b2t=jnp.asarray(params["b2"]).reshape(-1, 1).astype(jnp.float32),    # (hidden, 1)
        w3c=jnp.asarray(params["w3"]).astype(jnp.float32),                   # (hidden, 1)
        b3=jnp.asarray(params["b3"]).reshape(1, 1).astype(jnp.float32),      # SMEM scalar
    )


def _round_up(x, m):
    return ((x + m - 1) // m) * m


def critic_forward(x, prep, *, block_b=2048):
    """x: (B, n_states).  Returns (B, 1) f32 value estimates."""
    B, n_states = x.shape
    hidden = prep["w1t"].shape[0]

    # Batch-tile selection:
    #  - large B: tile of block_b (multiple of 128) -> few big grid steps
    #  - medium B (>=256): split into 2 steps so v7x megacore gets both cores
    #  - tiny B: one exact tile (block == array), zero padding, no ragged reads
    tb_target = max(128, _round_up(block_b, 128))
    if _round_up(B, 128) <= tb_target:
        tb = _round_up(pl.cdiv(B, 2), 128) if B >= 256 else B
    else:
        tb = tb_target
    grid_b = pl.cdiv(B, tb)
    b_pad = grid_b * tb            # ragged last tile handled by Pallas; extra cols dropped

    resident = lambda a: pl.BlockSpec(a.shape, lambda i: (0,) * a.ndim)

    flops = 2 * b_pad * (n_states * hidden + hidden * hidden + hidden)
    bytes_accessed = int(
        x.size * x.dtype.itemsize + 4 * b_pad
        + sum(prep[k].size * prep[k].dtype.itemsize
              for k in ("w1t", "b1t", "w2t", "b2t", "w3c", "b3")))

    out_t = pl.pallas_call(
        critic_kernel,
        out_shape=jax.ShapeDtypeStruct((1, b_pad), jnp.float32),
        grid_spec=pltpu.PrefetchScalarGridSpec(
            num_scalar_prefetch=0,
            grid=(grid_b,),
            in_specs=[
                pl.BlockSpec((tb, n_states), lambda i: (i, 0)),     # streamed x tile (native layout)
                resident(prep["w1t"]), resident(prep["b1t"]),       # weights stay
                resident(prep["w2t"]), resident(prep["b2t"]),       # VMEM-resident
                resident(prep["w3c"]),
                pl.BlockSpec(memory_space=pltpu.MemorySpace.SMEM),  # b3 scalar
            ],
            out_specs=pl.BlockSpec((1, tb), lambda i: (0, i)),      # lane-dense output
        ),
        compiler_params=pltpu.CompilerParams(
            dimension_semantics=("parallel",)),                     # megacore on v7x
        cost_estimate=pl.CostEstimate(
            flops=flops, transcendentals=0, bytes_accessed=bytes_accessed),
    )(x, prep["w1t"], prep["b1t"], prep["w2t"], prep["b2t"], prep["w3c"], prep["b3"])

    # (1, b_pad) -> (B, 1); padded / garbage columns (if any) are dropped here.
    return out_t.reshape(b_pad, 1)[:B]


def init_params(key, n_states_num, hidden_size):
    """Deterministic synthetic init (PyTorch-like uniform(-1/sqrt(fan_in), ...))."""
    ks = jax.random.split(key, 6)

    def lin(kw, kb, fan_in, fan_out):
        bound = 1.0 / jnp.sqrt(fan_in)
        w = jax.random.uniform(kw, (fan_in, fan_out), jnp.float32, -bound, bound)
        b = jax.random.uniform(kb, (1, fan_out), jnp.float32, -bound, bound)
        return w, b

    w1, b1 = lin(ks[0], ks[1], n_states_num, hidden_size)
    w2, b2 = lin(ks[2], ks[3], hidden_size, hidden_size)
    w3, b3 = lin(ks[4], ks[5], hidden_size, 1)
    return dict(w1=w1, b1=b1, w2=w2, b2=b2, w3=w3, b3=b3)


def reference_forward(x, p):
    h1 = jnp.maximum(x @ p["w1"] + p["b1"], 0.0)
    h2 = jnp.maximum(h1 @ p["w2"] + p["b2"], 0.0)
    return h2 @ p["w3"] + p["b3"]


if __name__ == "__main__":
    key = jax.random.PRNGKey(0)
    n_states_num, n_actions_num, hidden_size = 4, 2, 32

    k_x, k_x2, k_p = jax.random.split(key, 3)
    params = init_params(k_p, n_states_num, hidden_size)
    prep_f32 = prepare_critic_params(params, use_bf16=False)

    # f32 path, tiny batch (single exact tile, no padding)
    x = jax.random.normal(k_x, (8, n_states_num), jnp.float32)
    ref = reference_forward(x, params)
    out = jax.block_until_ready(critic_forward(x, prep_f32))
    assert out.shape == (8, 1)
    assert jnp.allclose(out, ref, atol=1e-4, rtol=1e-4), "f32 mismatch vs reference"

    # f32 path, multi-step grid with a ragged last tile (exercises the megacore split)
    x2 = jax.random.normal(k_x2, (300, n_states_num), jnp.float32)
    ref2 = reference_forward(x2, params)
    out2 = jax.block_until_ready(critic_forward(x2, prep_f32))
    assert out2.shape == (300, 1)
    assert jnp.allclose(out2, ref2, atol=1e-4, rtol=1e-4), "f32 multi-tile mismatch"

    # bf16 matmul-operand path (weights pre-cast once; x cast to bf16 on the VPU in-kernel,
    # so activations are quantized for the matmuls — looser tolerance is expected)
    prep_bf16 = prepare_critic_params(params, use_bf16=True)
    out_bf16 = jax.block_until_ready(critic_forward(x, prep_bf16))
    assert out_bf16.shape == (8, 1)
    assert jnp.allclose(out_bf16, ref, atol=5e-2, rtol=5e-2), "bf16 mismatch vs reference"

    print("KERNEL_OK")
</pallas_src>

<mosaic_0001>
module attributes {stable_mosaic.version = 11 : i64} {
  func.func @critic_kernel(%arg0: i32, %arg1: memref<8x4xf32, #tpu.memory_space<vmem>>, %arg2: memref<32x4xf32, #tpu.memory_space<vmem>>, %arg3: memref<32x1xf32, #tpu.memory_space<vmem>>, %arg4: memref<32x32xf32, #tpu.memory_space<vmem>>, %arg5: memref<32x1xf32, #tpu.memory_space<vmem>>, %arg6: memref<32x1xf32, #tpu.memory_space<vmem>>, %arg7: memref<1x1xf32, #tpu.memory_space<smem>>, %arg8: memref<1x8xf32, #tpu.memory_space<vmem>>) attributes {dimension_semantics = [#tpu.dimension_semantics<parallel>], iteration_bounds = array<i64: 1>, scalar_prefetch = 0 : i64, scratch_operands = 0 : i64, tpu.core_type = #tpu.core_type<tc>, window_params = [{transform_indices = @transform_0, window_bounds = array<i64: 8, 4>}, {pipeline_mode = #tpu.pipeline_mode<synchronous>, transform_indices = @transform_1, window_bounds = array<i64: 32, 4>}, {pipeline_mode = #tpu.pipeline_mode<synchronous>, transform_indices = @transform_2, window_bounds = array<i64: 32, 1>}, {pipeline_mode = #tpu.pipeline_mode<synchronous>, transform_indices = @transform_3, window_bounds = array<i64: 32, 32>}, {pipeline_mode = #tpu.pipeline_mode<synchronous>, transform_indices = @transform_4, window_bounds = array<i64: 32, 1>}, {pipeline_mode = #tpu.pipeline_mode<synchronous>, transform_indices = @transform_5, window_bounds = array<i64: 32, 1>}, {transform_indices = @transform_6, window_bounds = array<i64: 1, 1>}, {transform_indices = @transform_7, window_bounds = array<i64: 1, 8>}]} {
    %c0 = arith.constant 0 : index
    %c0_0 = arith.constant 0 : index
    %0 = vector.load %arg1[%c0, %c0_0] : memref<8x4xf32, #tpu.memory_space<vmem>>, vector<8x4xf32>
    %c0_1 = arith.constant 0 : index
    %c0_2 = arith.constant 0 : index
    %1 = vector.load %arg2[%c0_1, %c0_2] : memref<32x4xf32, #tpu.memory_space<vmem>>, vector<32x4xf32>
    %cst = arith.constant dense<0.000000e+00> : vector<32x8xf32>
    %2 = tpu.matmul %1, %0, %cst {dimension_numbers = #tpu.dot_dimension_numbers<[1], [1], [0], [0], [0, 0, 1, 0], [], []>} : vector<32x4xf32>, vector<8x4xf32>, vector<32x8xf32> -> vector<32x8xf32>
    %c0_3 = arith.constant 0 : index
    %c0_4 = arith.constant 0 : index
    %3 = vector.load %arg3[%c0_3, %c0_4] : memref<32x1xf32, #tpu.memory_space<vmem>>, vector<32x1xf32>
    %4 = vector.broadcast %3 : vector<32x1xf32> to vector<32x8xf32>
    %5 = arith.addf %2, %4 : vector<32x8xf32>
    %cst_5 = arith.constant 0.000000e+00 : f32
    %6 = vector.broadcast %cst_5 : f32 to vector<32x8xf32>
    %7 = arith.maximumf %5, %6 : vector<32x8xf32>
    %c0_6 = arith.constant 0 : index
    %c0_7 = arith.constant 0 : index
    %8 = vector.load %arg4[%c0_6, %c0_7] : memref<32x32xf32, #tpu.memory_space<vmem>>, vector<32x32xf32>
    %cst_8 = arith.constant dense<0.000000e+00> : vector<32x8xf32>
    %9 = tpu.matmul %8, %7, %cst_8 {dimension_numbers = #tpu.dot_dimension_numbers<[1], [0], [0], [1], [0, 0, 1, 1], [], []>} : vector<32x32xf32>, vector<32x8xf32>, vector<32x8xf32> -> vector<32x8xf32>
    %c0_9 = arith.constant 0 : index
    %c0_10 = arith.constant 0 : index
    %10 = vector.load %arg5[%c0_9, %c0_10] : memref<32x1xf32, #tpu.memory_space<vmem>>, vector<32x1xf32>
    %11 = vector.broadcast %10 : vector<32x1xf32> to vector<32x8xf32>
    %12 = arith.addf %9, %11 : vector<32x8xf32>
    %cst_11 = arith.constant 0.000000e+00 : f32
    %13 = vector.broadcast %cst_11 : f32 to vector<32x8xf32>
    %14 = arith.maximumf %12, %13 : vector<32x8xf32>
    %c0_12 = arith.constant 0 : index
    %c0_13 = arith.constant 0 : index
    %15 = vector.load %arg6[%c0_12, %c0_13] : memref<32x1xf32, #tpu.memory_space<vmem>>, vector<32x1xf32>
    %16 = vector.broadcast %15 : vector<32x1xf32> to vector<32x8xf32>
    %17 = arith.mulf %14, %16 : vector<32x8xf32>
    %cst_14 = arith.constant dense<0.000000e+00> : vector<8xf32>
    %18 = vector.multi_reduction <add>, %17, %cst_14 [0] : vector<32x8xf32> to vector<8xf32>
    %19 = vector.shape_cast %18 : vector<8xf32> to vector<1x8xf32>
    %c0_15 = arith.constant 0 : index
    %c0_16 = arith.constant 0 : index
    %20 = memref.load %arg7[%c0_15, %c0_16] : memref<1x1xf32, #tpu.memory_space<smem>>
    %21 = vector.broadcast %20 : f32 to vector<1x8xf32>
    %22 = arith.addf %19, %21 : vector<1x8xf32>
    %c0_17 = arith.constant 0 : index
    %c0_18 = arith.constant 0 : index
    %23 = vector.load %arg8[%c0_17, %c0_18] : memref<1x8xf32, #tpu.memory_space<vmem>>, vector<1x8xf32>
    tpu.vector_store %arg8[%c0_17, %c0_18], %22 {strides = array<i32>} : memref<1x8xf32, #tpu.memory_space<vmem>>, vector<1x8xf32>,
    return
  }
  func.func @transform_0(%arg0: i32) -> (i32, i32) {
    %c0_i32 = arith.constant 0 : i32
    %c0_i32_0 = arith.constant 0 : i32
    return %arg0, %c0_i32 : i32, i32
  }
  func.func @transform_1(%arg0: i32) -> (i32, i32) {
    %c0_i32 = arith.constant 0 : i32
    %c0_i32_0 = arith.constant 0 : i32
    %c0_i32_1 = arith.constant 0 : i32
    return %c0_i32, %c0_i32_0 : i32, i32
  }
  func.func @transform_2(%arg0: i32) -> (i32, i32) {
    %c0_i32 = arith.constant 0 : i32
    %c0_i32_0 = arith.constant 0 : i32
    %c0_i32_1 = arith.constant 0 : i32
    return %c0_i32, %c0_i32_0 : i32, i32
  }
  func.func @transform_3(%arg0: i32) -> (i32, i32) {
    %c0_i32 = arith.constant 0 : i32
    %c0_i32_0 = arith.constant 0 : i32
    %c0_i32_1 = arith.constant 0 : i32
    return %c0_i32, %c0_i32_0 : i32, i32
  }
  func.func @transform_4(%arg0: i32) -> (i32, i32) {
    %c0_i32 = arith.constant 0 : i32
    %c0_i32_0 = arith.constant 0 : i32
    %c0_i32_1 = arith.constant 0 : i32
    return %c0_i32, %c0_i32_0 : i32, i32
  }
  func.func @transform_5(%arg0: i32) -> (i32, i32) {
    %c0_i32 = arith.constant 0 : i32
    %c0_i32_0 = arith.constant 0 : i32
    %c0_i32_1 = arith.constant 0 : i32
    return %c0_i32, %c0_i32_0 : i32, i32
  }
  func.func @transform_6(%arg0: i32) -> (i32, i32) {
    %c0_i32 = arith.constant 0 : i32
    %c0_i32_0 = arith.constant 0 : i32
    %c0_i32_1 = arith.constant 0 : i32
    return %c0_i32, %c0_i32_0 : i32, i32
  }
  func.func @transform_7(%arg0: i32) -> (i32, i32) {
    %c0_i32 = arith.constant 0 : i32
    %c0_i32_0 = arith.constant 0 : i32
    return %c0_i32, %arg0 : i32, i32
  }
}

</mosaic_0001>

<llo_original>
// kernel: tpu_custom_call.1
$region0: #{tpu_custom_call.1}
  #allocation0 [shape = 'u32[]', space=smem, size = 0x4, offset = 0x4, fixed_abs, tag = 'smem constant byte address 0x4 - core index']
  #allocation1 [shape = 'u32[144,128]{1,0:T(1,128)}', space=vmem, size = 0x12000, scoped, tag = 'internal scratch']
  #allocation2 [shape = 'f32[1,1]{1,0:T(1,128)S(6)}', space=smem, size = 0x200, scoped, tag = 'scoped memory for tpu_custom_call.1']
  %s0 = inlined_call_operand.vmem [shape: f32[8,4], index: 0, kind: input, shape index: {}]
  %s1 = inlined_call_operand.vmem [shape: f32[32,4], index: 1, kind: input, shape index: {}]
  %s2 = inlined_call_operand.vmem [shape: f32[32,1], index: 2, kind: input, shape index: {}]
  %s3 = inlined_call_operand.vmem [shape: f32[32,32], index: 3, kind: input, shape index: {}]
  %s4 = inlined_call_operand.vmem [shape: f32[32,1], index: 4, kind: input, shape index: {}]
  %s5 = inlined_call_operand.vmem [shape: f32[32,1], index: 5, kind: input, shape index: {}]
  %s6 = inlined_call_operand.<no memory space> [shape: f32[1,1], index: 6, kind: input, shape index: {}]
  %s7 = inlined_call_operand.hbm [shape: f32[1,8], index: 7, kind: output, shape index: {}]
  %s8 = sld [smem:[#allocation0]]
  $region38: #{tpu_custom_call.1} parent=0
    _
  %s10 = ssub.s32 1, %s8
  %s11 = scalar_select 0, %s10, %s8
  %12 = sst [smem:[#allocation2]] %s6
  $region1: #{tpu_custom_call.1} parent=0
    #allocation3 [shape = 'u8[512]{0}', space=vmem, size = 0x400, scoped, tag = 'output window, operand 0, single buffered']
    #allocation4 [shape = 's32[1]{0}', space=sflag, size = 0x4, scoped, tag = 'scoped memory for tpu_custom_call.1']
    %13 = vsyncpa [#allocation4], 0
    // Predicated region
    $region2: #{tpu_custom_call.1} parent=1 // pred_check
      _
    $region3: #{tpu_custom_call.1} parent=1 // pred_check_branch
      %15 = sbr.rel (0) target = $region5
    $region4: #{tpu_custom_call.1} parent=1 // pred_region
      _
    $region5: #{tpu_custom_call.1} parent=1 // pred_fallthru
      _
    // Predicated region
    $region6: #{tpu_custom_call.1} parent=1 // pred_check
      _
    $region7: #{tpu_custom_call.1} parent=1 // pred_check_branch
      %17 = sbr.rel (0) target = $region9
    $region8: #{tpu_custom_call.1} parent=1 // pred_region
      _
    $region9: #{tpu_custom_call.1} parent=1 // pred_fallthru
      _
    // Predicated region
    $region10: #{tpu_custom_call.1} parent=1 // pred_check
      _
    $region11: #{tpu_custom_call.1} parent=1 // pred_check_branch
      %19 = sbr.rel (0) target = $region13
    $region12: #{tpu_custom_call.1} parent=1 // pred_region
      _
    $region13: #{tpu_custom_call.1} parent=1 // pred_fallthru
      _
    // Predicated region
    $region14: #{tpu_custom_call.1} parent=1 // pred_check
      _
    $region15: #{tpu_custom_call.1} parent=1 // pred_check_branch
      %21 = sbr.rel (0) target = $region17
    $region16: #{tpu_custom_call.1} parent=1 // pred_region
      _
    $region17: #{tpu_custom_call.1} parent=1 // pred_fallthru
      _
    // Predicated region
    $region18: #{tpu_custom_call.1} parent=1 // pred_check
      _
    $region19: #{tpu_custom_call.1} parent=1 // pred_check_branch
      %23 = sbr.rel (0) target = $region21
    $region20: #{tpu_custom_call.1} parent=1 // pred_region
      _
    $region21: #{tpu_custom_call.1} parent=1 // pred_fallthru
      _
    // Predicated region
    $region22: #{tpu_custom_call.1} parent=1 // pred_check
      _
    $region23: #{tpu_custom_call.1} parent=1 // pred_check_branch
      %25 = sbr.rel (0) target = $region25
    $region24: #{tpu_custom_call.1} parent=1 // pred_region
      _
    $region25: #{tpu_custom_call.1} parent=1 // pred_fallthru
      _
    // Predicated region
    $region26: #{tpu_custom_call.1} parent=1 // pred_check
      _
    $region27: #{tpu_custom_call.1} parent=1 // pred_check_branch
      %27 = sbr.rel (0) target = $region29
    $region28: #{tpu_custom_call.1} parent=1 // pred_region
      _
    $region29: #{tpu_custom_call.1} parent=1 // pred_fallthru
      _
    %v28 = vld [vmem:[%s0] sm:$0xff]
    %v29 = vld [vmem:[%s1] sm:$0xff]
    %v30 = vld [vmem:[%s1 + $0x8] sm:$0xff]
    %v31 = vld [vmem:[%s1 + $0x10] sm:$0xff]
    %v32 = vld [vmem:[%s1 + $0x18] sm:$0xff]
    %v33 = vld [vmem:[%s2] sm:$0xff]
    %v34 = vld [vmem:[%s2 + $0x8] sm:$0xff]
    %v35 = vld [vmem:[%s2 + $0x10] sm:$0xff]
    %v36 = vld [vmem:[%s2 + $0x18] sm:$0xff]
    %38 = vset.pattern.permute.xlu0 0
    %39 = vperm.xlu0 %38, %v33
    %v40 = vpop.permute.xlu0 %39
    %43 = vset.pattern.permute.xlu0 0
    %44 = vperm.xlu0 %43, %v34
    %v45 = vpop.permute.xlu0 %44
    %48 = vset.pattern.permute.xlu0 0
    %49 = vperm.xlu0 %48, %v35
    %v50 = vpop.permute.xlu0 %49
    %53 = vset.pattern.permute.xlu0 0
    %54 = vperm.xlu0 %53, %v36
    %v55 = vpop.permute.xlu0 %54
    %vm57 = vcmask 31744
    %v59 = vsel %vm57, %v29, 0
    %v62 = vsel %vm57, %v30, 0
    %v65 = vsel %vm57, %v31, 0
    %v68 = vsel %vm57, %v32, 0
    %v71 = vsel %vm57, %v28, 0
    %73 = vmatprep.subr.mxu0 0.0
    %74 = vmatpush1.xpose.msra.mxu0 %v71
    %75 = vmatprep.subr.mxu0 0.0
    %76 = vmatpush1.xpose.msra.mxu0 0.0
    %77 = vmatprep.subr.mxu0 0.0
    %78 = vmatpush1.xpose.msra.mxu0 0.0
    %79 = vmatprep.subr.mxu0 0.0
    %80 = vmatpush1.xpose.msra.mxu0 0.0
    %81 = vmatprep.subr.mxu0 0.0
    %82 = vmatpush1.xpose.msra.mxu0 0.0
    %83 = vmatprep.subr.mxu0 0.0
    %84 = vmatpush1.xpose.msra.mxu0 0.0
    %85 = vmatprep.subr.mxu0 0.0
    %86 = vmatpush1.xpose.msra.mxu0 0.0
    %87 = vmatprep.subr.mxu0 0.0
    %88 = vmatpush1.xpose.msra.mxu0 0.0
    %89 = vmatprep.subr.mxu0 0.0
    %90 = vmatpush1.xpose.msra.mxu0 0.0
    %91 = vmatprep.subr.mxu0 0.0
    %92 = vmatpush1.xpose.msra.mxu0 0.0
    %93 = vmatprep.subr.mxu0 0.0
    %94 = vmatpush1.xpose.msra.mxu0 0.0
    %95 = vmatprep.subr.mxu0 0.0
    %96 = vmatpush1.xpose.msra.mxu0 0.0
    %97 = vmatprep.subr.mxu0 0.0
    %98 = vmatpush1.xpose.msra.mxu0 0.0
    %99 = vmatprep.subr.mxu0 0.0
    %100 = vmatpush1.xpose.msra.mxu0 0.0
    %101 = vmatprep.subr.mxu0 0.0
    %102 = vmatpush1.xpose.msra.mxu0 0.0
    %103 = vmatprep.subr.mxu0 0.0
    %104 = vmatpush1.xpose.msra.mxu0 0.0
    %105 = vmatprep.subr.mxu0 0.0
    %106 = vmatpush1.xpose.msra.mxu0 0.0
    %107 = vmatprep.subr.mxu0 0.0
    %108 = vmatpush1.xpose.msra.mxu0 0.0
    %109 = vmatprep.subr.mxu0 0.0
    %110 = vmatpush1.xpose.msra.mxu0 0.0
    %111 = vmatprep.subr.mxu0 0.0
    %112 = vmatpush1.xpose.msra.mxu0 0.0
    %113 = vmatprep.subr.mxu0 0.0
    %114 = vmatpush1.xpose.msra.mxu0 0.0
    %115 = vmatprep.subr.mxu0 0.0
    %116 = vmatpush1.xpose.msra.mxu0 0.0
    %117 = vmatprep.subr.mxu0 0.0
    %118 = vmatpush1.xpose.msra.mxu0 0.0
    %119 = vmatprep.subr.mxu0 0.0
    %120 = vmatpush1.xpose.msra.mxu0 0.0
    %121 = vmatprep.subr.mxu0 0.0
    %122 = vmatpush1.xpose.msra.mxu0 0.0
    %123 = vmatprep.subr.mxu0 0.0
    %124 = vmatpush1.xpose.msra.mxu0 0.0
    %125 = vmatprep.subr.mxu0 0.0
    %126 = vmatpush1.xpose.msra.mxu0 0.0
    %127 = vmatprep.subr.mxu0 0.0
    %128 = vmatpush1.xpose.msra.mxu0 0.0
    %129 = vmatprep.subr.mxu0 0.0
    %130 = vmatpush1.xpose.msra.mxu0 0.0
    %131 = vmatprep.subr.mxu0 0.0
    %132 = vmatpush1.xpose.msra.mxu0 0.0
    %133 = vmatprep.subr.mxu0 0.0
    %134 = vmatpush1.xpose.msra.mxu0 0.0
    %135 = vmatprep.subr.mxu0 0.0
    %136 = vmatpush1.xpose.msra.mxu0 0.0
    %137 = vmatprep.mubr.f32.mxu0 0.0
    %138 = vmatmul.mubr.f32.gmra.mrb[0].mxu0 %v59
    %v139 = vpop.f32.mrb[0].mxu0
    %v140 = vadd.f32 %v40, %v139
    %v141 = vpop.f32.mrb[0].mxu0
    %142 = vmatprep.mubr.f32.mxu0 0.0
    %143 = vmatmul.mubr.f32.gmra.mrb[0].mxu0 %v62
    %v144 = vpop.f32.mrb[0].mxu0
    %v145 = vadd.f32 %v45, %v144
    %v146 = vpop.f32.mrb[0].mxu0
    %147 = vmatprep.mubr.f32.mxu0 0.0
    %148 = vmatmul.mubr.f32.gmra.mrb[0].mxu0 %v65
    %v149 = vpop.f32.mrb[0].mxu0
    %v150 = vadd.f32 %v50, %v149
    %v151 = vpop.f32.mrb[0].mxu0
    %152 = vmatprep.mubr.f32.mxu0 0.0
    %153 = vmatmul.mubr.f32.gmra.mrb[0].mxu0 %v68
    %v154 = vpop.f32.mrb[0].mxu0
    %v155 = vadd.f32 %v55, %v154
    %v156 = vpop.f32.mrb[0].mxu0
    %157 = vdwg.mxu0
    %v158 = vmax.f32 %v140, 0.0
    %v159 = vmax.f32 %v145, 0.0
    %v160 = vmax.f32 %v150, 0.0
    %v161 = vmax.f32 %v155, 0.0
    %v162 = vld [vmem:[%s3] sm:$0xff]
    %v163 = vld [vmem:[%s3 + $0x8] sm:$0xff]
    %v164 = vld [vmem:[%s3 + $0x10] sm:$0xff]
    %v165 = vld [vmem:[%s3 + $0x18] sm:$0xff]
    %v166 = vld [vmem:[%s4] sm:$0xff]
    %v167 = vld [vmem:[%s4 + $0x8] sm:$0xff]
    %v168 = vld [vmem:[%s4 + $0x10] sm:$0xff]
    %v169 = vld [vmem:[%s4 + $0x18] sm:$0xff]
    %171 = vset.pattern.permute.xlu0 0
    %172 = vperm.xlu0 %171, %v166
    %v173 = vpop.permute.xlu0 %172
    %176 = vset.pattern.permute.xlu0 0
    %177 = vperm.xlu0 %176, %v167
    %v178 = vpop.permute.xlu0 %177
    %181 = vset.pattern.permute.xlu0 0
    %182 = vperm.xlu0 %181, %v168
    %v183 = vpop.permute.xlu0 %182
    %186 = vset.pattern.permute.xlu0 0
    %187 = vperm.xlu0 %186, %v169
    %v188 = vpop.permute.xlu0 %187
    %vm190 = vcmask 261120
    %v192 = vsel %vm190, %v162, 0
    %v195 = vsel %vm190, %v163, 0
    %v198 = vsel %vm190, %v164, 0
    %v201 = vsel %vm190, %v165, 0
    %203 = vmatprep.subr.mxu0 0.0
    %204 = vmatpush1.msra.mxu0 %v158
    %205 = vmatprep.subr.mxu0 0.0
    %206 = vmatpush1.msra.mxu0 %v159
    %207 = vmatprep.subr.mxu0 0.0
    %208 = vmatpush1.msra.mxu0 %v160
    %209 = vmatprep.subr.mxu0 0.0
    %210 = vmatpush1.msra.mxu0 %v161
    %211 = vmatprep.subr.mxu0 0.0
    %212 = vmatpush1.msra.mxu0 0.0
    %213 = vmatprep.subr.mxu0 0.0
    %214 = vmatpush1.msra.mxu0 0.0
    %215 = vmatprep.subr.mxu0 0.0
    %216 = vmatpush1.msra.mxu0 0.0
    %217 = vmatprep.subr.mxu0 0.0
    %218 = vmatpush1.msra.mxu0 0.0
    %219 = vmatprep.subr.mxu0 0.0
    %220 = vmatpush1.msra.mxu0 0.0
    %221 = vmatprep.subr.mxu0 0.0
    %222 = vmatpush1.msra.mxu0 0.0
    %223 = vmatprep.subr.mxu0 0.0
    %224 = vmatpush1.msra.mxu0 0.0
    %225 = vmatprep.subr.mxu0 0.0
    %226 = vmatpush1.msra.mxu0 0.0
    %227 = vmatprep.subr.mxu0 0.0
    %228 = vmatpush1.msra.mxu0 0.0
    %229 = vmatprep.subr.mxu0 0.0
    %230 = vmatpush1.msra.mxu0 0.0
    %231 = vmatprep.subr.mxu0 0.0
    %232 = vmatpush1.msra.mxu0 0.0
    %233 = vmatprep.subr.mxu0 0.0
    %234 = vmatpush1.msra.mxu0 0.0
    %235 = vmatprep.subr.mxu0 0.0
    %236 = vmatpush1.msra.mxu0 0.0
    %237 = vmatprep.subr.mxu0 0.0
    %238 = vmatpush1.msra.mxu0 0.0
    %239 = vmatprep.subr.mxu0 0.0
    %240 = vmatpush1.msra.mxu0 0.0
    %241 = vmatprep.subr.mxu0 0.0
    %242 = vmatpush1.msra.mxu0 0.0
    %243 = vmatprep.subr.mxu0 0.0
    %244 = vmatpush1.msra.mxu0 0.0
    %245 = vmatprep.subr.mxu0 0.0
    %246 = vmatpush1.msra.mxu0 0.0
    %247 = vmatprep.subr.mxu0 0.0
    %248 = vmatpush1.msra.mxu0 0.0
    %249 = vmatprep.subr.mxu0 0.0
    %250 = vmatpush1.msra.mxu0 0.0
    %251 = vmatprep.subr.mxu0 0.0
    %252 = vmatpush1.msra.mxu0 0.0
    %253 = vmatprep.subr.mxu0 0.0
    %254 = vmatpush1.msra.mxu0 0.0
    %255 = vmatprep.subr.mxu0 0.0
    %256 = vmatpush1.msra.mxu0 0.0
    %257 = vmatprep.subr.mxu0 0.0
    %258 = vmatpush1.msra.mxu0 0.0
    %259 = vmatprep.subr.mxu0 0.0
    %260 = vmatpush1.msra.mxu0 0.0
    %261 = vmatprep.subr.mxu0 0.0
    %262 = vmatpush1.msra.mxu0 0.0
    %263 = vmatprep.subr.mxu0 0.0
    %264 = vmatpush1.msra.mxu0 0.0
    %265 = vmatprep.subr.mxu0 0.0
    %266 = vmatpush1.msra.mxu0 0.0
    %267 = vmatprep.mubr.f32.mxu0 0.0
    %268 = vmatmul.mubr.f32.gmra.mrb[0].mxu0 %v192
    %v269 = vpop.f32.mrb[0].mxu0
    %v270 = vadd.f32 %v173, %v269
    %v271 = vpop.f32.mrb[0].mxu0
    %272 = vmatprep.mubr.f32.mxu0 0.0
    %273 = vmatmul.mubr.f32.gmra.mrb[0].mxu0 %v195
    %v274 = vpop.f32.mrb[0].mxu0
    %v275 = vadd.f32 %v178, %v274
    %v276 = vpop.f32.mrb[0].mxu0
    %277 = vmatprep.mubr.f32.mxu0 0.0
    %278 = vmatmul.mubr.f32.gmra.mrb[0].mxu0 %v198
    %v279 = vpop.f32.mrb[0].mxu0
    %v280 = vadd.f32 %v183, %v279
    %v281 = vpop.f32.mrb[0].mxu0
    %282 = vmatprep.mubr.f32.mxu0 0.0
    %283 = vmatmul.mubr.f32.gmra.mrb[0].mxu0 %v201
    %v284 = vpop.f32.mrb[0].mxu0
    %v285 = vadd.f32 %v188, %v284
    %v286 = vpop.f32.mrb[0].mxu0
    %287 = vdwg.mxu0
    %v288 = vmax.f32 %v270, 0.0
    %v289 = vmax.f32 %v275, 0.0
    %v290 = vmax.f32 %v280, 0.0
    %v291 = vmax.f32 %v285, 0.0
    %v292 = vld [vmem:[%s5] sm:$0xff]
    %v293 = vld [vmem:[%s5 + $0x8] sm:$0xff]
    %v294 = vld [vmem:[%s5 + $0x10] sm:$0xff]
    %v295 = vld [vmem:[%s5 + $0x18] sm:$0xff]
    %297 = vset.pattern.permute.xlu0 0
    %298 = vperm.xlu0 %297, %v292
    %v299 = vpop.permute.xlu0 %298
    %302 = vset.pattern.permute.xlu0 0
    %303 = vperm.xlu0 %302, %v293
    %v304 = vpop.permute.xlu0 %303
    %307 = vset.pattern.permute.xlu0 0
    %308 = vperm.xlu0 %307, %v294
    %v309 = vpop.permute.xlu0 %308
    %312 = vset.pattern.permute.xlu0 0
    %313 = vperm.xlu0 %312, %v295
    %v314 = vpop.permute.xlu0 %313
    %v316 = vmul.f32 %v288, %v299
    %v317 = vmul.f32 %v289, %v304
    %v318 = vmul.f32 %v290, %v309
    %v319 = vmul.f32 %v291, %v314
    %vm320 = vcmask 64512
    %v321 = vsel %vm320, %v316, 0.0
    %v322 = vsel %vm320, %v317, 0.0
    %v323 = vadd.f32 %v321, %v322
    %v324 = vsel %vm320, %v318, 0.0
    %v325 = vadd.f32 %v323, %v324
    %v326 = vsel %vm320, %v319, 0.0
    %v327 = vadd.f32 %v325, %v326
    %v328 = vrot.slane %v327, 4
    %v329 = vadd.f32 %v327, %v328
    %v330 = vrot.slane %v329, 2
    %v331 = vadd.f32 %v329, %v330
    %v332 = vrot.slane %v331, 1
    %v333 = vadd.f32 %v331, %v332
    %s334 = sld [smem:[#allocation2]]
    %v335 = vstv %s334
    %v336 = vadd.f32 %v333, %v335
    %vm337 = vcmask 57344
    %338 = vst.msk [vmem:[#allocation3] sm:$0x1] %vm337, %v336
    // Predicated region
    $region30: #{tpu_custom_call.1} parent=1 // pred_check
      _
    $region31: #{tpu_custom_call.1} parent=1 // pred_check_branch
      %340 = sbr.rel (0) target = $region33
    $region32: #{tpu_custom_call.1} parent=1 // pred_region
      %s342 = ssub.s32 16, 16
      %343 = vsyncadd [#allocation4], %s342
      %s345 = sshll.u32 [#allocation3], 4
      %s346 = int_to_ptr.vmem [resolvable:$true] %s345
      %348 = dma.vmem_to_hbm [thread:$0]  %s346, 16, %s7, [#allocation4]
    $region33: #{tpu_custom_call.1} parent=1 // pred_fallthru
      _
    // Predicated region
    $region34: #{tpu_custom_call.1} parent=1 // pred_check
      _
    $region35: #{tpu_custom_call.1} parent=1 // pred_check_branch
      %350 = sbr.rel (0) target = $region37
    $region36: #{tpu_custom_call.1} parent=1 // pred_region
      %351 = dma.done [#allocation4], 16
    $region37: #{tpu_custom_call.1} parent=1 // pred_fallthru
      _
    %352 = vsyncpa [#allocation4], 1

</llo_original>
